<compile_context>
chip_gen: v6e
topology: v6e:2x2x1
jax: 0.10.0
libtpu: 0.0.40
codegen_flags: <defaults>
</compile_context>

<pallas_src>
import jax
import jax.numpy as jnp
from jax.experimental import pallas as pl
from jax.experimental.pallas import tpu as pltpu


def _encoder_kernel(feat_ref,   # VMEM (tb, P, F) bf16  -- F lane-dense
                    w_ref,      # VMEM (F, E)    f32   -- BN + img-linear + combiner(img) + 1/P fused
                    b_ref,      # VMEM (1, E)    f32   -- all biases fused
                    lbl_ref,    # VMEM (tb, E)   f32   -- label half (precomposed gather, wrapper)
                    out_ref):   # VMEM (tb, E)   f32
    # Sum-pool over spatial (sublane axis), accumulating in f32 without
    # materializing a full-tile f32 copy of the dominant tensor.
    pooled = jnp.sum(feat_ref[...], axis=1, dtype=jnp.float32)            # (tb, F)
    # Single MXU matmul against the fully fused (F, E) weight (f32 acc).
    img = jnp.dot(pooled, w_ref[...], preferred_element_type=jnp.float32)  # (tb, E)
    out_ref[...] = (img + lbl_ref[...] + b_ref[...]).astype(out_ref.dtype)


def _round_up(x, m):
    return ((x + m - 1) // m) * m


def _vmem_bytes_estimate(tb, P, F, E):
    """Estimated VMEM footprint of one grid step, including layout padding."""
    p_pad = _round_up(P, 16)     # bf16 sublane packing of the second-minor dim
    f_pad = _round_up(F, 128)    # lanes
    e_pad = _round_up(E, 128)
    feat = 2 * tb * p_pad * f_pad * 2            # double-buffered bf16 feature tile
    wgt = 2 * f_pad * e_pad * 4                  # fused weight (f32, still 2-buffered)
    small = 2 * (8 * e_pad + tb * e_pad) * 4     # bias + label contribution (2-buffered)
    out = 2 * tb * e_pad * 4
    return feat + wgt + small + out


def image_label_encoder_forward(features_nchw, labels, params, *, tb=None):
    """features_nchw: [bs, F, k, k] (ResNet backbone output), labels: [bs, S] int32.

    `tb` (batch tile) is chosen automatically from the device VMEM capacity
    (75% budget, double-buffered bf16 feature tile included); pass an explicit
    multiple of 8 to override.
    """
    bs, F, kh, kw = features_nchw.shape
    P = kh * kw
    E = params["b_img"].shape[-1]
    S = labels.shape[1]

    # ---------------- algebraic folding (f32, once per call, negligible) ----------------
    eps = 1e-5
    bn_scale = params["bn_gamma"] / jnp.sqrt(params["bn_var"] + eps)
    bn_bias = params["bn_beta"] - params["bn_mean"] * bn_scale
    w_img_f = params["w_img"] * bn_scale[None, :]                      # (F, E)
    b_img_f = params["b_img"] * bn_scale + bn_bias                     # (E,)
    w_ci = params["w_comb"][:E, :]                                     # image half
    w_cl = params["w_comb"][E:, :]                                     # label half
    w_fused = (w_img_f @ w_ci) / P                                     # (F, E)  kept f32
    b_fused = b_img_f @ w_ci + params["b_comb"]                        # (E,)
    # Label path: tiny (bs*S gathers of E-vectors).  Precompute in the wrapper
    # instead of a serialized sub-vreg scalar gather inside the kernel.
    emb_comb = (params["emb_tbl"] @ w_cl) / S                          # (V, E)
    label_sum = emb_comb[labels.astype(jnp.int32)].sum(axis=1).astype(jnp.float32)  # (bs, E)

    # ---------------- feature layout: F on the lane axis ----------------
    # NCHW -> (bs, P, F), fused with the bf16 cast into a single XLA pass.
    # Backbones that can emit NHWC directly should do so and skip this.
    feat = jnp.transpose(features_nchw.reshape(bs, F, P), (0, 2, 1)).astype(jnp.bfloat16)

    # ---------------- per-generation tile / VMEM budget ----------------
    try:
        vmem_cap = int(pltpu.get_tpu_info().vmem_capacity_bytes)
    except Exception:
        vmem_cap = 64 * 1024 * 1024          # conservative fallback (v7x per-TC VMEM)
    vmem_budget = int(vmem_cap * 0.75)

    if tb is None:
        tb = 256
        while tb > 8 and _vmem_bytes_estimate(tb, P, F, E) > vmem_budget:
            tb -= 8
    tb = max(8, (tb // 8) * 8)
    tb = min(tb, _round_up(bs, 8))
    if bs >= 16:
        # Keep at least 2 grid steps so both v7x TensorCores get work.
        tb = min(tb, max(8, _round_up((bs + 1) // 2, 8)))

    bs_pad = _round_up(bs, tb)
    if bs_pad != bs:
        feat = jnp.pad(feat, ((0, bs_pad - bs), (0, 0), (0, 0)))
        label_sum = jnp.pad(label_sum, ((0, bs_pad - bs), (0, 0)))

    vmem_limit = max(_vmem_bytes_estimate(tb, P, F, E) + (4 << 20), 32 << 20)
    vmem_limit = int(min(vmem_limit, int(vmem_cap * 0.9)))

    cost = pl.CostEstimate(
        flops=int(2 * bs_pad * F * E + bs_pad * P * F),
        transcendentals=0,
        bytes_accessed=int(bs_pad * P * F * 2          # bf16 feature stream (dominant)
                           + F * E * 4 + E * 4         # fused weight + bias
                           + bs_pad * E * 4            # label contribution
                           + bs_pad * E * 4),          # output
    )

    out = pl.pallas_call(
        _encoder_kernel,
        out_shape=jax.ShapeDtypeStruct((bs_pad, E), jnp.float32),
        grid=(bs_pad // tb,),
        in_specs=[
            pl.BlockSpec((tb, P, F), lambda i: (i, 0, 0)),   # feature tile (F lane-dense)
            pl.BlockSpec((F, E), lambda i: (0, 0)),          # fused weight (grid-invariant)
            pl.BlockSpec((1, E), lambda i: (0, 0)),          # fused bias
            pl.BlockSpec((tb, E), lambda i: (i, 0)),         # precomputed label contribution
        ],
        out_specs=pl.BlockSpec((tb, E), lambda i: (i, 0)),
        compiler_params=pltpu.CompilerParams(
            dimension_semantics=("parallel",),               # megacore batch sharding (v7x)
            vmem_limit_bytes=vmem_limit,
        ),
        cost_estimate=cost,
    )(
        feat,
        w_fused.astype(jnp.float32),
        b_fused.reshape(1, E).astype(jnp.float32),
        label_sum,
    )
    return out[:bs]


def _reference_forward(features_nchw, labels, params):
    """Pure-JAX reference with eval-mode PyTorch semantics (no folding)."""
    bs, F, kh, kw = features_nchw.shape
    eps = 1e-5
    pooled = features_nchw.reshape(bs, F, kh * kw).mean(axis=2)            # avgpool
    x = pooled @ params["w_img"] + params["b_img"]                          # linear
    img_emb = ((x - params["bn_mean"]) / jnp.sqrt(params["bn_var"] + eps)
               * params["bn_gamma"] + params["bn_beta"])                    # BN (eval)
    lbl_emb = params["emb_tbl"][labels].mean(axis=1)                        # embedding + mean
    emb = jnp.concatenate([img_emb, lbl_emb], axis=1)
    return emb @ params["w_comb"] + params["b_comb"]                        # combiner


if __name__ == "__main__":
    # Small shapes consistent with the module (feat_dim stands in for ResNet-50's
    # 2048 channels, k*k is the 7x7-like spatial map, emb_dim kept lane-dense).
    bs, feat_dim, k = 16, 256, 4
    emb_dim, num_tokens, seq_len = 128, 64, 8

    key = jax.random.PRNGKey(0)
    keys = jax.random.split(key, 8)

    features = jax.random.normal(keys[0], (bs, feat_dim, k, k), dtype=jnp.float32)
    labels = jax.random.randint(keys[1], (bs, seq_len), 0, num_tokens, dtype=jnp.int32)

    params = {
        "w_img": 0.05 * jax.random.normal(keys[2], (feat_dim, emb_dim), dtype=jnp.float32),
        "b_img": 0.01 * jax.random.normal(keys[3], (emb_dim,), dtype=jnp.float32),
        "bn_gamma": 1.0 + 0.1 * jax.random.normal(keys[4], (emb_dim,), dtype=jnp.float32),
        "bn_beta": 0.05 * jax.random.normal(keys[5], (emb_dim,), dtype=jnp.float32),
        "bn_mean": jnp.zeros((emb_dim,), dtype=jnp.float32),   # freshly-init running stats
        "bn_var": jnp.ones((emb_dim,), dtype=jnp.float32),
        "emb_tbl": 0.1 * jax.random.normal(keys[6], (num_tokens, emb_dim), dtype=jnp.float32),
        "w_comb": 0.05 * jax.random.normal(keys[7], (2 * emb_dim, emb_dim), dtype=jnp.float32),
        "b_comb": 0.01 * jnp.ones((emb_dim,), dtype=jnp.float32),
    }

    out = image_label_encoder_forward(features, labels, params)   # auto tb -> grid of 2
    out = jax.block_until_ready(out)

    ref = _reference_forward(features, labels, params)
    assert out.shape == (bs, emb_dim)
    max_err = float(jnp.max(jnp.abs(out - ref)))
    assert jnp.allclose(out, ref, atol=2e-2, rtol=2e-2), f"mismatch vs reference: {max_err}"

    print("KERNEL_OK")
</pallas_src>

<mosaic_0001>
module attributes {stable_mosaic.version = 11 : i64} {
  func.func @_encoder_kernel(%arg0: i32, %arg1: memref<8x16x256xbf16, #tpu.memory_space<vmem>>, %arg2: memref<256x128xf32, #tpu.memory_space<vmem>>, %arg3: memref<1x128xf32, #tpu.memory_space<vmem>>, %arg4: memref<8x128xf32, #tpu.memory_space<vmem>>, %arg5: memref<8x128xf32, #tpu.memory_space<vmem>>) attributes {dimension_semantics = [#tpu.dimension_semantics<parallel>], iteration_bounds = array<i64: 2>, scalar_prefetch = 0 : i64, scratch_operands = 0 : i64, tpu.core_type = #tpu.core_type<tc>, window_params = [{transform_indices = @transform_0, window_bounds = array<i64: 8, 16, 256>}, {pipeline_mode = #tpu.pipeline_mode<synchronous>, transform_indices = @transform_1, window_bounds = array<i64: 256, 128>}, {pipeline_mode = #tpu.pipeline_mode<synchronous>, transform_indices = @transform_2, window_bounds = array<i64: 1, 128>}, {transform_indices = @transform_3, window_bounds = array<i64: 8, 128>}, {transform_indices = @transform_4, window_bounds = array<i64: 8, 128>}]} {
    %c0 = arith.constant 0 : index
    %c0_0 = arith.constant 0 : index
    %c0_1 = arith.constant 0 : index
    %0 = vector.load %arg1[%c0, %c0_0, %c0_1] : memref<8x16x256xbf16, #tpu.memory_space<vmem>>, vector<8x16x256xbf16>
    %1 = arith.extf %0 : vector<8x16x256xbf16> to vector<8x16x256xf32>
    %cst = arith.constant dense<0.000000e+00> : vector<8x256xf32>
    %2 = vector.multi_reduction <add>, %1, %cst [1] : vector<8x16x256xf32> to vector<8x256xf32>
    %c0_2 = arith.constant 0 : index
    %c0_3 = arith.constant 0 : index
    %3 = vector.load %arg2[%c0_2, %c0_3] : memref<256x128xf32, #tpu.memory_space<vmem>>, vector<256x128xf32>
    %cst_4 = arith.constant dense<0.000000e+00> : vector<8x128xf32>
    %4 = tpu.matmul %2, %3, %cst_4 {dimension_numbers = #tpu.dot_dimension_numbers<[1], [0], [0], [1], [0, 0, 1, 1], [], []>} : vector<8x256xf32>, vector<256x128xf32>, vector<8x128xf32> -> vector<8x128xf32>
    %c0_5 = arith.constant 0 : index
    %c0_6 = arith.constant 0 : index
    %5 = vector.load %arg4[%c0_5, %c0_6] : memref<8x128xf32, #tpu.memory_space<vmem>>, vector<8x128xf32>
    %6 = arith.addf %4, %5 : vector<8x128xf32>
    %c0_7 = arith.constant 0 : index
    %c0_8 = arith.constant 0 : index
    %7 = vector.load %arg3[%c0_7, %c0_8] : memref<1x128xf32, #tpu.memory_space<vmem>>, vector<1x128xf32>
    %8 = vector.broadcast %7 : vector<1x128xf32> to vector<8x128xf32>
    %9 = arith.addf %6, %8 : vector<8x128xf32>
    %c0_9 = arith.constant 0 : index
    %c0_10 = arith.constant 0 : index
    %10 = vector.load %arg5[%c0_9, %c0_10] : memref<8x128xf32, #tpu.memory_space<vmem>>, vector<8x128xf32>
    tpu.vector_store %arg5[%c0_9, %c0_10], %9 {strides = array<i32>} : memref<8x128xf32, #tpu.memory_space<vmem>>, vector<8x128xf32>,
    return
  }
  func.func @transform_0(%arg0: i32) -> (i32, i32, i32) {
    %c0_i32 = arith.constant 0 : i32
    %c0_i32_0 = arith.constant 0 : i32
    %c0_i32_1 = arith.constant 0 : i32
    return %arg0, %c0_i32, %c0_i32_0 : i32, i32, i32
  }
  func.func @transform_1(%arg0: i32) -> (i32, i32) {
    %c0_i32 = arith.constant 0 : i32
    %c0_i32_0 = arith.constant 0 : i32
    %c0_i32_1 = arith.constant 0 : i32
    return %c0_i32, %c0_i32_0 : i32, i32
  }
  func.func @transform_2(%arg0: i32) -> (i32, i32) {
    %c0_i32 = arith.constant 0 : i32
    %c0_i32_0 = arith.constant 0 : i32
    %c0_i32_1 = arith.constant 0 : i32
    return %c0_i32, %c0_i32_0 : i32, i32
  }
  func.func @transform_3(%arg0: i32) -> (i32, i32) {
    %c0_i32 = arith.constant 0 : i32
    %c0_i32_0 = arith.constant 0 : i32
    return %arg0, %c0_i32 : i32, i32
  }
  func.func @transform_4(%arg0: i32) -> (i32, i32) {
    %c0_i32 = arith.constant 0 : i32
    %c0_i32_0 = arith.constant 0 : i32
    return %arg0, %c0_i32 : i32, i32
  }
}

</mosaic_0001>

<llo_original>
// kernel: tpu_custom_call.1
$region0: #{tpu_custom_call.1}
  #allocation0 [shape = 'u32[]', space=smem, size = 0x4, offset = 0x4, fixed_abs, tag = 'smem constant byte address 0x4 - core index']
  #allocation1 [shape = 'u32[144,128]{1,0:T(1,128)}', space=vmem, size = 0x12000, scoped, tag = 'internal scratch']
  %s0 = inlined_call_operand.hbm [shape: bf16[16,16,256], index: 0, kind: input, shape index: {}]
  %s1 = inlined_call_operand.hbm [shape: f32[256,128], index: 1, kind: input, shape index: {}]
  %s2 = inlined_call_operand.vmem [shape: f32[1,128], index: 2, kind: input, shape index: {}]
  %s3 = inlined_call_operand.hbm [shape: f32[16,128], index: 3, kind: input, shape index: {}]
  %s4 = inlined_call_operand.hbm [shape: f32[16,128], index: 4, kind: output, shape index: {}]
  %s5 = sld [smem:[#allocation0]]
  $region61: #{tpu_custom_call.1} parent=0
    _
  %s7 = ssub.s32 1, %s5
  %s8 = scalar_select 0, %s7, %s5
  $region1: #{tpu_custom_call.1} parent=0
    #allocation2 [shape = 'u8[131072]{0}', space=vmem, size = 0x20000, scoped, tag = 'input window, operand 0']
    #allocation3 [shape = 's32[2]{0}', space=sflag, size = 0x8, scoped, tag = 'scoped memory for tpu_custom_call.1']
    #allocation4 [shape = 's32[2]{0}', space=sflag, size = 0x8, scoped, tag = 'scoped memory for tpu_custom_call.1']
    #allocation5 [shape = 'u8[131072]{0}', space=vmem, size = 0x20000, scoped, tag = 'input window, operand 1, single buffered']
    #allocation6 [shape = 's32[1]{0}', space=sflag, size = 0x4, scoped, tag = 'scoped memory for tpu_custom_call.1']
    #allocation7 [shape = 'u8[8192]{0}', space=vmem, size = 0x2000, scoped, tag = 'input window, operand 3']
    #allocation8 [shape = 'u8[8192]{0}', space=vmem, size = 0x2000, scoped, tag = 'output window, operand 0']
    %9 = vsyncpa [#allocation3], 0
    %s10 = scalar_lea.sflag [#allocation3], 1
    %11 = vsyncpa %s10, 0
    %12 = vsyncpa [#allocation6], 0
    %13 = vsyncpa [#allocation4], 0
    %s14 = scalar_lea.sflag [#allocation4], 1
    %15 = vsyncpa %s14, 0
    loop: start=0, step=1, limit=4
    $region2: #{tpu_custom_call.1} parent=1 // loop_pre_header
      _
    $region3: #{tpu_custom_call.1} parent=1 // loop_header
      %s17 = sphi 0, %s21
      %p18 = scmp.ge.s32.totalorder %s17, 4
      %s27 = sphi 0, %s29
      %s30 = sphi 0, %s27
      %s31 = sphi 0, %s30
      %s47 = sphi 0, %s31
      %s51 = sphi 0, %s51
      %s53 = sphi 0, %s51
      %s54 = sphi 0, %s53
      %s68 = sphi 0, %s54
      %s72 = sphi 0, %s72
      %s74 = sphi 0, %s72
      %s75 = sphi 0, %s74
      %s89 = sphi 0, %s75
      %s95 = sphi 0, %s97
      %s98 = sphi 0, %s95
      %s99 = sphi 0, %s98
      %s115 = sphi 0, %s99
      %s121 = sphi 0, %s123
      %s124 = sphi 0, %s121
      %s125 = sphi 0, %s124
      %s141 = sphi 0, %s125
    $region4: #{tpu_custom_call.1} parent=1 // loop_header_branch
      %20 = sbr.rel (%p18) target = $region8
    $region5: #{tpu_custom_call.1} parent=1 // loop_body
      %s22 = ssub.s32 %s17, 1
      %s23 = ssub.s32 %s17, 2
      %s24 = sadd.s32 %s17, 1
      %s25 = ssub.s32 %s17, %s24
      %p26 = scmp.eq.s32.totalorder %s25, 0
      %s28 = sadd.s32 %s27, 1
      %s29 = scalar_select %p26, %s27, %s28
      %p32 = pneg %p26
      %p33 = scmp.eq.s32.totalorder %s17, 1
      %p34 = por %p32, %p33
      %p35 = scmp.ne.s32.totalorder %s27, %s30
      %p36 = scmp.eq.s32.totalorder %s17, 0
      %p37 = por %p35, %p36
      %p38 = scmp.ne.s32.totalorder %s27, %s30
      %p39 = scmp.eq.s32.totalorder %s22, 1
      %p40 = por %p38, %p39
      %p41 = scmp.ne.s32.totalorder %s30, %s31
      %p42 = scmp.eq.s32.totalorder %s22, 0
      %p43 = por %p41, %p42
      %p44 = scmp.ne.s32.totalorder %s30, %s31
      %p45 = scmp.eq.s32.totalorder %s23, 1
      %p46 = por %p44, %p45
      %p48 = scmp.ne.s32.totalorder %s31, %s47
      %p49 = scmp.eq.s32.totalorder %s23, 0
      %p50 = por %p48, %p49
      %s52 = sadd.s32 %s51, 1
      %p55 = scmp.eq.s32.totalorder %s17, 1
      %p56 = scmp.ne.s32.totalorder %s51, %s53
      %p57 = scmp.eq.s32.totalorder %s17, 0
      %p58 = por %p56, %p57
      %p59 = scmp.ne.s32.totalorder %s51, %s53
      %p60 = scmp.eq.s32.totalorder %s22, 1
      %p61 = por %p59, %p60
      %p62 = scmp.ne.s32.totalorder %s53, %s54
      %p63 = scmp.eq.s32.totalorder %s22, 0
      %p64 = por %p62, %p63
      %p65 = scmp.ne.s32.totalorder %s53, %s54
      %p66 = scmp.eq.s32.totalorder %s23, 1
      %p67 = por %p65, %p66
      %p69 = scmp.ne.s32.totalorder %s54, %s68
      %p70 = scmp.eq.s32.totalorder %s23, 0
      %p71 = por %p69, %p70
      %s73 = sadd.s32 %s72, 1
      %p76 = scmp.eq.s32.totalorder %s17, 1
      %p77 = scmp.ne.s32.totalorder %s72, %s74
      %p78 = scmp.eq.s32.totalorder %s17, 0
      %p79 = por %p77, %p78
      %p80 = scmp.ne.s32.totalorder %s72, %s74
      %p81 = scmp.eq.s32.totalorder %s22, 1
      %p82 = por %p80, %p81
      %p83 = scmp.ne.s32.totalorder %s74, %s75
      %p84 = scmp.eq.s32.totalorder %s22, 0
      %p85 = por %p83, %p84
      %p86 = scmp.ne.s32.totalorder %s74, %s75
      %p87 = scmp.eq.s32.totalorder %s23, 1
      %p88 = por %p86, %p87
      %p90 = scmp.ne.s32.totalorder %s75, %s89
      %p91 = scmp.eq.s32.totalorder %s23, 0
      %p92 = por %p90, %p91
      %s93 = ssub.s32 %s17, %s24
      %p94 = scmp.eq.s32.totalorder %s93, 0
      %s96 = sadd.s32 %s95, 1
      %s97 = scalar_select %p94, %s95, %s96
      %p100 = pneg %p94
      %p101 = scmp.eq.s32.totalorder %s17, 1
      %p102 = por %p100, %p101
      %p103 = scmp.ne.s32.totalorder %s95, %s98
      %p104 = scmp.eq.s32.totalorder %s17, 0
      %p105 = por %p103, %p104
      %p106 = scmp.ne.s32.totalorder %s95, %s98
      %p107 = scmp.eq.s32.totalorder %s22, 1
      %p108 = por %p106, %p107
      %p109 = scmp.ne.s32.totalorder %s98, %s99
      %p110 = scmp.eq.s32.totalorder %s22, 0
      %p111 = por %p109, %p110
      %p112 = scmp.ne.s32.totalorder %s98, %s99
      %p113 = scmp.eq.s32.totalorder %s23, 1
      %p114 = por %p112, %p113
      %p116 = scmp.ne.s32.totalorder %s99, %s115
      %p117 = scmp.eq.s32.totalorder %s23, 0
      %p118 = por %p116, %p117
      %s119 = ssub.s32 %s17, %s24
      %p120 = scmp.eq.s32.totalorder %s119, 0
      %s122 = sadd.s32 %s121, 1
      %s123 = scalar_select %p120, %s121, %s122
      %p126 = pneg %p120
      %p127 = scmp.eq.s32.totalorder %s17, 1
      %p128 = por %p126, %p127
      %p129 = scmp.ne.s32.totalorder %s121, %s124
      %p130 = scmp.eq.s32.totalorder %s17, 0
      %p131 = por %p129, %p130
      %p132 = scmp.ne.s32.totalorder %s121, %s124
      %p133 = scmp.eq.s32.totalorder %s22, 1
      %p134 = por %p132, %p133
      %p135 = scmp.ne.s32.totalorder %s124, %s125
      %p136 = scmp.eq.s32.totalorder %s22, 0
      %p137 = por %p135, %p136
      %p138 = scmp.ne.s32.totalorder %s124, %s125
      %p139 = scmp.eq.s32.totalorder %s23, 1
      %p140 = por %p138, %p139
      %p142 = scmp.ne.s32.totalorder %s125, %s141
      %p143 = scmp.eq.s32.totalorder %s23, 0
      %p144 = por %p142, %p143
      %p145 = scmp.le.s32.totalorder 1, %s17
      %p146 = scmp.lt.s32.totalorder %s17, 3
      %p147 = pnand %p145, %p146
      %p148 = pneg %p147
      // Predicated region
      $region9: #{tpu_custom_call.1} parent=5 // pred_check
        _
      $region10: #{tpu_custom_call.1} parent=5 // pred_check_branch
        %150 = sbr.rel (%p147) target = $region12
      $region11: #{tpu_custom_call.1} parent=5 // pred_region
        %s151 = ssub.s32 %s17, 1
        // Predicated region
        $region13: #{tpu_custom_call.1} parent=11 // pred_check
          %p152 = pneg %p64
        $region14: #{tpu_custom_call.1} parent=11 // pred_check_branch
          %154 = sbr.rel (%p152) target = $region16
        $region15: #{tpu_custom_call.1} parent=11 // pred_region
          %s156 = ssub.s32 4096, 4096
          %157 = vsyncadd [#allocation6], %s156
          %s158 = sshll.u32 [#allocation5], 4
          %s159 = int_to_ptr.vmem [resolvable:$true] %s158
          %164 = dma.hbm_to_vmem [thread:$0]  %s1, 4096, %s159, [#allocation6], 128, 128, 8
        $region16: #{tpu_custom_call.1} parent=11 // pred_fallthru
          _
        // Predicated region
        $region17: #{tpu_custom_call.1} parent=11 // pred_check
          %p165 = pneg %p85
        $region18: #{tpu_custom_call.1} parent=11 // pred_check_branch
          %167 = sbr.rel (%p165) target = $region20
        $region19: #{tpu_custom_call.1} parent=11 // pred_region
          _
        $region20: #{tpu_custom_call.1} parent=11 // pred_fallthru
          _
      $region12: #{tpu_custom_call.1} parent=5 // pred_fallthru
        _
      %p168 = scmp.lt.s32.totalorder %s17, 2
      // Predicated region
      $region21: #{tpu_custom_call.1} parent=5 // pred_check
        %p169 = pneg %p168
      $region22: #{tpu_custom_call.1} parent=5 // pred_check_branch
        %171 = sbr.rel (%p169) target = $region24
      $region23: #{tpu_custom_call.1} parent=5 // pred_region
        // Predicated region
        $region25: #{tpu_custom_call.1} parent=23 // pred_check
          %p172 = pneg %p37
        $region26: #{tpu_custom_call.1} parent=23 // pred_check_branch
          %174 = sbr.rel (%p172) target = $region28
        $region27: #{tpu_custom_call.1} parent=23 // pred_region
          %s175 = sand.u32 %s17, 1
          %s176 = scalar_lea.sflag [#allocation3], %s175
          %s177 = sand.u32 %s27, 1
          %s178 = smul.addr %s177, 128
          %s179 = scalar_lea.vmem [#allocation2], %s178
          %s180 = smul.u32 8, %s17
          %s182 = ssub.s32 2048, 2048
          %183 = vsyncadd %s176, %s182
          %s184 = smul.addr %s180, 4
          %s185 = smul.addr %s184, 64
          %s186 = scalar_lea.hbm %s0, %s185
          %s187 = sshll.u32 %s179, 4
          %s188 = int_to_ptr.vmem [resolvable:$true] %s187
          %193 = dma.hbm_to_vmem [thread:$0]  %s186, 2048, %s188, %s176, 128, 128, 8
        $region28: #{tpu_custom_call.1} parent=23 // pred_fallthru
          _
        // Predicated region
        $region29: #{tpu_custom_call.1} parent=23 // pred_check
          %p194 = pneg %p105
        $region30: #{tpu_custom_call.1} parent=23 // pred_check_branch
          %196 = sbr.rel (%p194) target = $region32
        $region31: #{tpu_custom_call.1} parent=23 // pred_region
          %s197 = sand.u32 %s17, 1
          %s198 = scalar_lea.sflag [#allocation3], %s197
          %s199 = sand.u32 %s95, 1
          %s200 = smul.addr %s199, 8
          %s201 = scalar_lea.vmem [#allocation7], %s200
          %s203 = ssub.s32 128, 128
          %204 = vsyncadd %s198, %s203
          %s205 = smul.addr %s17, 128
          %s206 = scalar_lea.hbm %s3, %s205
          %s208 = sshll.u32 %s201, 4
          %s209 = int_to_ptr.vmem [resolvable:$true] %s208
          %211 = dma.hbm_to_vmem [thread:$0]  %s206, 128, %s209, %s198
        $region32: #{tpu_custom_call.1} parent=23 // pred_fallthru
          _
      $region24: #{tpu_custom_call.1} parent=5 // pred_fallthru
        _
      %p212 = scmp.le.s32.totalorder 1, %s17
      %p213 = scmp.lt.s32.totalorder %s17, 3
      %p214 = pnand %p212, %p213
      %p215 = pneg %p214
      // Predicated region
      $region33: #{tpu_custom_call.1} parent=5 // pred_check
        _
      $region34: #{tpu_custom_call.1} parent=5 // pred_check_branch
        %217 = sbr.rel (%p214) target = $region36
      $region35: #{tpu_custom_call.1} parent=5 // pred_region
        %s218 = ssub.s32 %s17, 1
        %s219 = sand.u32 %s22, 1
        %s220 = scalar_lea.sflag [#allocation3], %s219
        %s221 = sand.u32 %s30, 1
        %s222 = smul.addr %s221, 128
        %s223 = scalar_lea.vmem [#allocation2], %s222
        // Predicated region
        $region37: #{tpu_custom_call.1} parent=35 // pred_check
          %p224 = pneg %p43
        $region38: #{tpu_custom_call.1} parent=35 // pred_check_branch
          %226 = sbr.rel (%p224) target = $region40
        $region39: #{tpu_custom_call.1} parent=35 // pred_region
          %227 = dma.done %s220, 2048
        $region40: #{tpu_custom_call.1} parent=35 // pred_fallthru
          _
        // Predicated region
        $region41: #{tpu_custom_call.1} parent=35 // pred_check
          %p228 = pneg %p64
        $region42: #{tpu_custom_call.1} parent=35 // pred_check_branch
          %230 = sbr.rel (%p228) target = $region44
        $region43: #{tpu_custom_call.1} parent=35 // pred_region
          %231 = dma.done [#allocation6], 4096
        $region44: #{tpu_custom_call.1} parent=35 // pred_fallthru
          _
        %s232 = sand.u32 %s22, 1
        %s233 = scalar_lea.sflag [#allocation3], %s232
        %s234 = sand.u32 %s98, 1
        %s235 = smul.addr %s234, 8
        %s236 = scalar_lea.vmem [#allocation7], %s235
        // Predicated region
        $region45: #{tpu_custom_call.1} parent=35 // pred_check
          %p237 = pneg %p111
        $region46: #{tpu_custom_call.1} parent=35 // pred_check_branch
          %239 = sbr.rel (%p237) target = $region48
        $region47: #{tpu_custom_call.1} parent=35 // pred_region
          %240 = dma.done %s233, 128
        $region48: #{tpu_custom_call.1} parent=35 // pred_fallthru
          _
        %s241 = sand.u32 %s22, 1
        %s242 = scalar_lea.sflag [#allocation3], %s241
        %s243 = sand.u32 %s30, 1
        %s244 = smul.addr %s243, 128
        %s245 = scalar_lea.vmem [#allocation2], %s244
        %p246 = pneg %p43
        %p247 = pneg %p40
        %p248 = pneg %p64
        %p249 = pneg %p61
        %p250 = pneg %p85
        %p251 = pneg %p82
        %s252 = sand.u32 %s22, 1
        %s253 = scalar_lea.sflag [#allocation3], %s252
        %s254 = sand.u32 %s98, 1
        %s255 = smul.addr %s254, 8
        %s256 = scalar_lea.vmem [#allocation7], %s255
        %p257 = pneg %p111
        %p258 = pneg %p108
        %p259 = pneg %p137
        %p260 = pneg %p134
        %s261 = sand.u32 %s124, 1
        %s262 = scalar_lea.sflag [#allocation4], %s261
        %s263 = sand.u32 %s124, 1
        %s264 = smul.addr %s263, 8
        %s265 = scalar_lea.vmem [#allocation8], %s264
        %s266 = smul.u32 8, %s22
        %v267 = vld [vmem:[%s223] sm:$0xff]
        %v268 = vld [vmem:[%s223 + $0x8] sm:$0xff]
        %v269 = vld [vmem:[%s223 + $0x10] sm:$0xff]
        %v270 = vld [vmem:[%s223 + $0x18] sm:$0xff]
        %v271 = vld [vmem:[%s223 + $0x20] sm:$0xff]
        %v272 = vld [vmem:[%s223 + $0x28] sm:$0xff]
        %v273 = vld [vmem:[%s223 + $0x30] sm:$0xff]
        %v274 = vld [vmem:[%s223 + $0x38] sm:$0xff]
        %v275 = vld [vmem:[%s223 + $0x40] sm:$0xff]
        %v276 = vld [vmem:[%s223 + $0x48] sm:$0xff]
        %v277 = vld [vmem:[%s223 + $0x50] sm:$0xff]
        %v278 = vld [vmem:[%s223 + $0x58] sm:$0xff]
        %v279 = vld [vmem:[%s223 + $0x60] sm:$0xff]
        %v280 = vld [vmem:[%s223 + $0x68] sm:$0xff]
        %v281 = vld [vmem:[%s223 + $0x70] sm:$0xff]
        %v282 = vld [vmem:[%s223 + $0x78] sm:$0xff]
        %v283 = vunpack.c.l.bf16 %v267
        %v284 = vunpack.c.h.bf16 %v267
        %v285 = vunpack.c.l.bf16 %v268
        %v286 = vunpack.c.h.bf16 %v268
        %v287 = vunpack.c.l.bf16 %v269
        %v288 = vunpack.c.h.bf16 %v269
        %v289 = vunpack.c.l.bf16 %v270
        %v290 = vunpack.c.h.bf16 %v270
        %v291 = vunpack.c.l.bf16 %v271
        %v292 = vunpack.c.h.bf16 %v271
        %v293 = vunpack.c.l.bf16 %v272
        %v294 = vunpack.c.h.bf16 %v272
        %v295 = vunpack.c.l.bf16 %v273
        %v296 = vunpack.c.h.bf16 %v273
        %v297 = vunpack.c.l.bf16 %v274
        %v298 = vunpack.c.h.bf16 %v274
        %v299 = vunpack.c.l.bf16 %v275
        %v300 = vunpack.c.h.bf16 %v275
        %v301 = vunpack.c.l.bf16 %v276
        %v302 = vunpack.c.h.bf16 %v276
        %v303 = vunpack.c.l.bf16 %v277
        %v304 = vunpack.c.h.bf16 %v277
        %v305 = vunpack.c.l.bf16 %v278
        %v306 = vunpack.c.h.bf16 %v278
        %v307 = vunpack.c.l.bf16 %v279
        %v308 = vunpack.c.h.bf16 %v279
        %v309 = vunpack.c.l.bf16 %v280
        %v310 = vunpack.c.h.bf16 %v280
        %v311 = vunpack.c.l.bf16 %v281
        %v312 = vunpack.c.h.bf16 %v281
        %v313 = vunpack.c.l.bf16 %v282
        %v314 = vunpack.c.h.bf16 %v282
        %v315 = vadd.f32 %v283, %v285
        %v316 = vrot.slane %v315, 4
        %v317 = vadd.f32 %v315, %v316
        %v318 = vrot.slane %v317, 2
        %v319 = vadd.f32 %v317, %v318
        %v320 = vrot.slane %v319, 1
        %v321 = vadd.f32 %v319, %v320
        %v322 = vadd.f32 %v284, %v286
        %v323 = vrot.slane %v322, 4
        %v324 = vadd.f32 %v322, %v323
        %v325 = vrot.slane %v324, 2
        %v326 = vadd.f32 %v324, %v325
        %v327 = vrot.slane %v326, 1
        %v328 = vadd.f32 %v326, %v327
        %v329 = vadd.f32 %v287, %v289
        %v330 = vrot.slane %v329, 4
        %v331 = vadd.f32 %v329, %v330
        %v332 = vrot.slane %v331, 2
        %v333 = vadd.f32 %v331, %v332
        %v334 = vrot.slane %v333, 1
        %v335 = vadd.f32 %v333, %v334
        %v336 = vadd.f32 %v288, %v290
        %v337 = vrot.slane %v336, 4
        %v338 = vadd.f32 %v336, %v337
        %v339 = vrot.slane %v338, 2
        %v340 = vadd.f32 %v338, %v339
        %v341 = vrot.slane %v340, 1
        %v342 = vadd.f32 %v340, %v341
        %v343 = vadd.f32 %v291, %v293
        %v344 = vrot.slane %v343, 4
        %v345 = vadd.f32 %v343, %v344
        %v346 = vrot.slane %v345, 2
        %v347 = vadd.f32 %v345, %v346
        %v348 = vrot.slane %v347, 1
        %v349 = vadd.f32 %v347, %v348
        %v350 = vadd.f32 %v292, %v294
        %v351 = vrot.slane %v350, 4
        %v352 = vadd.f32 %v350, %v351
        %v353 = vrot.slane %v352, 2
        %v354 = vadd.f32 %v352, %v353
        %v355 = vrot.slane %v354, 1
        %v356 = vadd.f32 %v354, %v355
        %v357 = vadd.f32 %v295, %v297
        %v358 = vrot.slane %v357, 4
        %v359 = vadd.f32 %v357, %v358
        %v360 = vrot.slane %v359, 2
        %v361 = vadd.f32 %v359, %v360
        %v362 = vrot.slane %v361, 1
        %v363 = vadd.f32 %v361, %v362
        %v364 = vadd.f32 %v296, %v298
        %v365 = vrot.slane %v364, 4
        %v366 = vadd.f32 %v364, %v365
        %v367 = vrot.slane %v366, 2
        %v368 = vadd.f32 %v366, %v367
        %v369 = vrot.slane %v368, 1
        %v370 = vadd.f32 %v368, %v369
        %v371 = vadd.f32 %v299, %v301
        %v372 = vrot.slane %v371, 4
        %v373 = vadd.f32 %v371, %v372
        %v374 = vrot.slane %v373, 2
        %v375 = vadd.f32 %v373, %v374
        %v376 = vrot.slane %v375, 1
        %v377 = vadd.f32 %v375, %v376
        %v378 = vadd.f32 %v300, %v302
        %v379 = vrot.slane %v378, 4
        %v380 = vadd.f32 %v378, %v379
        %v381 = vrot.slane %v380, 2
        %v382 = vadd.f32 %v380, %v381
        %v383 = vrot.slane %v382, 1
        %v384 = vadd.f32 %v382, %v383
        %v385 = vadd.f32 %v303, %v305
        %v386 = vrot.slane %v385, 4
        %v387 = vadd.f32 %v385, %v386
        %v388 = vrot.slane %v387, 2
        %v389 = vadd.f32 %v387, %v388
        %v390 = vrot.slane %v389, 1
        %v391 = vadd.f32 %v389, %v390
        %v392 = vadd.f32 %v304, %v306
        %v393 = vrot.slane %v392, 4
        %v394 = vadd.f32 %v392, %v393
        %v395 = vrot.slane %v394, 2
        %v396 = vadd.f32 %v394, %v395
        %v397 = vrot.slane %v396, 1
        %v398 = vadd.f32 %v396, %v397
        %v399 = vadd.f32 %v307, %v309
        %v400 = vrot.slane %v399, 4
        %v401 = vadd.f32 %v399, %v400
        %v402 = vrot.slane %v401, 2
        %v403 = vadd.f32 %v401, %v402
        %v404 = vrot.slane %v403, 1
        %v405 = vadd.f32 %v403, %v404
        %v406 = vadd.f32 %v308, %v310
        %v407 = vrot.slane %v406, 4
        %v408 = vadd.f32 %v406, %v407
        %v409 = vrot.slane %v408, 2
        %v410 = vadd.f32 %v408, %v409
        %v411 = vrot.slane %v410, 1
        %v412 = vadd.f32 %v410, %v411
        %v413 = vadd.f32 %v311, %v313
        %v414 = vrot.slane %v413, 4
        %v415 = vadd.f32 %v413, %v414
        %v416 = vrot.slane %v415, 2
        %v417 = vadd.f32 %v415, %v416
        %v418 = vrot.slane %v417, 1
        %v419 = vadd.f32 %v417, %v418
        %v420 = vadd.f32 %v312, %v314
        %v421 = vrot.slane %v420, 4
        %v422 = vadd.f32 %v420, %v421
        %v423 = vrot.slane %v422, 2
        %v424 = vadd.f32 %v422, %v423
        %v425 = vrot.slane %v424, 1
        %v426 = vadd.f32 %v424, %v425
        %v427 = vld [vmem:[#allocation5] sm:$0xff]
        %v428 = vld [vmem:[#allocation5 + $0x8] sm:$0xff]
        %v429 = vld [vmem:[#allocation5 + $0x10] sm:$0xff]
        %v430 = vld [vmem:[#allocation5 + $0x18] sm:$0xff]
        %v431 = vld [vmem:[#allocation5 + $0x20] sm:$0xff]
        %v432 = vld [vmem:[#allocation5 + $0x28] sm:$0xff]
        %v433 = vld [vmem:[#allocation5 + $0x30] sm:$0xff]
        %v434 = vld [vmem:[#allocation5 + $0x38] sm:$0xff]
        %v435 = vld [vmem:[#allocation5 + $0x40] sm:$0xff]
        %v436 = vld [vmem:[#allocation5 + $0x48] sm:$0xff]
        %v437 = vld [vmem:[#allocation5 + $0x50] sm:$0xff]
        %v438 = vld [vmem:[#allocation5 + $0x58] sm:$0xff]
        %v439 = vld [vmem:[#allocation5 + $0x60] sm:$0xff]
        %v440 = vld [vmem:[#allocation5 + $0x68] sm:$0xff]
        %v441 = vld [vmem:[#allocation5 + $0x70] sm:$0xff]
        %v442 = vld [vmem:[#allocation5 + $0x78] sm:$0xff]
        %v443 = vld [vmem:[#allocation5 + $0x80] sm:$0xff]
        %v444 = vld [vmem:[#allocation5 + $0x88] sm:$0xff]
        %v445 = vld [vmem:[#allocation5 + $0x90] sm:$0xff]
        %v446 = vld [vmem:[#allocation5 + $0x98] sm:$0xff]
        %v447 = vld [vmem:[#allocation5 + $0xa0] sm:$0xff]
        %v448 = vld [vmem:[#allocation5 + $0xa8] sm:$0xff]
        %v449 = vld [vmem:[#allocation5 + $0xb0] sm:$0xff]
        %v450 = vld [vmem:[#allocation5 + $0xb8] sm:$0xff]
        %v451 = vld [vmem:[#allocation5 + $0xc0] sm:$0xff]
        %v452 = vld [vmem:[#allocation5 + $0xc8] sm:$0xff]
        %v453 = vld [vmem:[#allocation5 + $0xd0] sm:$0xff]
        %v454 = vld [vmem:[#allocation5 + $0xd8] sm:$0xff]
        %v455 = vld [vmem:[#allocation5 + $0xe0] sm:$0xff]
        %v456 = vld [vmem:[#allocation5 + $0xe8] sm:$0xff]
        %v457 = vld [vmem:[#allocation5 + $0xf0] sm:$0xff]
        %v458 = vld [vmem:[#allocation5 + $0xf8] sm:$0xff]
        %v459 = vld [vmem:[%s236] sm:$0xff]
        %vm476 = vcmask 1041409
        %v477 = vsel %vm476, %v335, %v321
        %vm478 = vcmask 1042434
        %v479 = vsel %vm478, %v349, %v477
        %vm480 = vcmask 1043459
        %v481 = vsel %vm480, %v363, %v479
        %vm482 = vcmask 1044484
        %v483 = vsel %vm482, %v377, %v481
        %vm484 = vcmask 1045509
        %v485 = vsel %vm484, %v391, %v483
        %vm486 = vcmask 1046534
        %v487 = vsel %vm486, %v405, %v485
        %vm488 = vcmask 1047559
        %v489 = vsel %vm488, %v419, %v487
        %v490 = vsel %vm476, %v342, %v328
        %v491 = vsel %vm478, %v356, %v490
        %v492 = vsel %vm480, %v370, %v491
        %v493 = vsel %vm482, %v384, %v492
        %v494 = vsel %vm484, %v398, %v493
        %v495 = vsel %vm486, %v412, %v494
        %v496 = vsel %vm488, %v426, %v495
        %499 = vmatprep.subr.mxu0 0.0
        %500 = vmatpush1.msra.mxu0 %v442
        %501 = vmatprep.subr.mxu0 0.0
        %502 = vmatpush1.msra.mxu0 %v441
        %503 = vmatprep.subr.mxu0 0.0
        %504 = vmatpush1.msra.mxu0 %v440
        %505 = vmatprep.subr.mxu0 0.0
        %506 = vmatpush1.msra.mxu0 %v439
        %507 = vmatprep.subr.mxu0 0.0
        %508 = vmatpush1.msra.mxu0 %v438
        %509 = vmatprep.subr.mxu0 0.0
        %510 = vmatpush1.msra.mxu0 %v437
        %511 = vmatprep.subr.mxu0 0.0
        %512 = vmatpush1.msra.mxu0 %v436
        %513 = vmatprep.subr.mxu0 0.0
        %514 = vmatpush1.msra.mxu0 %v435
        %515 = vmatprep.subr.mxu0 0.0
        %516 = vmatpush1.msra.mxu0 %v434
        %517 = vmatprep.subr.mxu0 0.0
        %518 = vmatpush1.msra.mxu0 %v433
        %519 = vmatprep.subr.mxu0 0.0
        %520 = vmatpush1.msra.mxu0 %v432
        %521 = vmatprep.subr.mxu0 0.0
        %522 = vmatpush1.msra.mxu0 %v431
        %523 = vmatprep.subr.mxu0 0.0
        %524 = vmatpush1.msra.mxu0 %v430
        %525 = vmatprep.subr.mxu0 0.0
        %526 = vmatpush1.msra.mxu0 %v429
        %527 = vmatprep.subr.mxu0 0.0
        %528 = vmatpush1.msra.mxu0 %v428
        %529 = vmatprep.subr.mxu0 0.0
        %530 = vmatpush1.msra.mxu0 %v427
        %531 = vmatprep.subr.mxu0 0.0
        %532 = vmatpush2.msra.mxu0 %v458
        %533 = vmatprep.subr.mxu0 0.0
        %534 = vmatpush2.msra.mxu0 %v457
        %535 = vmatprep.subr.mxu0 0.0
        %536 = vmatpush2.msra.mxu0 %v456
        %537 = vmatprep.subr.mxu0 0.0
        %538 = vmatpush2.msra.mxu0 %v455
        %539 = vmatprep.subr.mxu0 0.0
        %540 = vmatpush2.msra.mxu0 %v454
        %541 = vmatprep.subr.mxu0 0.0
        %542 = vmatpush2.msra.mxu0 %v453
        %543 = vmatprep.subr.mxu0 0.0
        %544 = vmatpush2.msra.mxu0 %v452
        %545 = vmatprep.subr.mxu0 0.0
        %546 = vmatpush2.msra.mxu0 %v451
        %547 = vmatprep.subr.mxu0 0.0
        %548 = vmatpush2.msra.mxu0 %v450
        %549 = vmatprep.subr.mxu0 0.0
        %550 = vmatpush2.msra.mxu0 %v449
        %551 = vmatprep.subr.mxu0 0.0
        %552 = vmatpush2.msra.mxu0 %v448
        %553 = vmatprep.subr.mxu0 0.0
        %554 = vmatpush2.msra.mxu0 %v447
        %555 = vmatprep.subr.mxu0 0.0
        %556 = vmatpush2.msra.mxu0 %v446
        %557 = vmatprep.subr.mxu0 0.0
        %558 = vmatpush2.msra.mxu0 %v445
        %559 = vmatprep.subr.mxu0 0.0
        %560 = vmatpush2.msra.mxu0 %v444
        %561 = vmatprep.subr.mxu0 0.0
        %562 = vmatpush2.msra.mxu0 %v443
        %563 = vmatprep.mubr.f32.mxu0 %v496
        %564 = vmatmul.mubr.f32.gmra.mxu0 %v489
        %v565 = vpop.f32.mrf.mxu0
        %v566 = vadd.f32 %v459, %v565
        %v567 = vpop.f32.mrf.mxu0
        %568 = vdwg.mxu0
        %v569 = vld [vmem:[%s2] sm:$0x1]
        %v571 = vlaneseq
        %v572 = vshrl.u32 %v571, 7
        %v573 = vsub.s32 0, %v572
        %v574 = vrot.slane %v569, %v573
        %v576 = vadd.f32 %v566, %v574
        %577 = vst [vmem:[%s265] sm:$0xff] %v576
        %s578 = sand.u32 %s124, 1
        %s579 = scalar_lea.sflag [#allocation4], %s578
        %s580 = sand.u32 %s124, 1
        %s581 = smul.addr %s580, 8
        %s582 = scalar_lea.vmem [#allocation8], %s581
        // Predicated region
        $region49: #{tpu_custom_call.1} parent=35 // pred_check
          %p583 = pneg %p134
        $region50: #{tpu_custom_call.1} parent=35 // pred_check_branch
          %585 = sbr.rel (%p583) target = $region52
        $region51: #{tpu_custom_call.1} parent=35 // pred_region
          %s587 = ssub.s32 128, 128
          %588 = vsyncadd %s579, %s587
          %s589 = smul.addr %s22, 128
          %s590 = scalar_lea.hbm %s4, %s589
          %s592 = sshll.u32 %s582, 4
          %s593 = int_to_ptr.vmem [resolvable:$true] %s592
          %595 = dma.vmem_to_hbm [thread:$0]  %s593, 128, %s590, %s579
        $region52: #{tpu_custom_call.1} parent=35 // pred_fallthru
          _
      $region36: #{tpu_custom_call.1} parent=5 // pred_fallthru
        _
      %p596 = scmp.le.s32.totalorder 2, %s17
      // Predicated region
      $region53: #{tpu_custom_call.1} parent=5 // pred_check
        %p597 = pneg %p596
      $region54: #{tpu_custom_call.1} parent=5 // pred_check_branch
        %599 = sbr.rel (%p597) target = $region56
      $region55: #{tpu_custom_call.1} parent=5 // pred_region
        %s600 = ssub.s32 %s17, 2
        // Predicated region
        $region57: #{tpu_custom_call.1} parent=55 // pred_check
          %p601 = pneg %p140
        $region58: #{tpu_custom_call.1} parent=55 // pred_check_branch
          %603 = sbr.rel (%p601) target = $region60
        $region59: #{tpu_custom_call.1} parent=55 // pred_region
          %s604 = sand.u32 %s125, 1
          %s605 = scalar_lea.sflag [#allocation4], %s604
          %s606 = sand.u32 %s125, 1
          %s607 = smul.addr %s606, 8
          %s608 = scalar_lea.vmem [#allocation8], %s607
          %609 = dma.done %s605, 128
        $region60: #{tpu_custom_call.1} parent=55 // pred_fallthru
          _
      $region56: #{tpu_custom_call.1} parent=5 // pred_fallthru
        _
    $region6: #{tpu_custom_call.1} parent=1 // loop_footer
      %s21 = sadd.s32 1, %s17
    $region7: #{tpu_custom_call.1} parent=1 // loop_footer_branch
      %16 = sbr.rel target = $region3
    $region8: #{tpu_custom_call.1} parent=1 // loop_exit
      _
    %610 = vsyncpa [#allocation3], 1
    %s611 = scalar_lea.sflag [#allocation3], 1
    %612 = vsyncpa %s611, 1
    %613 = vsyncpa [#allocation6], 1
    %614 = vsyncpa [#allocation4], 1
    %s615 = scalar_lea.sflag [#allocation4], 1
    %616 = vsyncpa %s615, 1

</llo_original>
